<compile_context>
chip_gen: v7x
topology: tpu7x:2x2x1
jax: 0.10.0
libtpu: 0.0.40
codegen_flags: <defaults>
</compile_context>

<pallas_src>
import functools

import jax
import jax.numpy as jnp
from jax.experimental import pallas as pl
from jax.experimental.pallas import tpu as pltpu

BN_EPS = 1e-5  # PyTorch BatchNorm1d default

_LANE = 128
_BATCH_ALIGN = 16   # bf16 sublane packing is (16, 128): keep bf16 batch tiles tile-aligned


def _round_up(x, m):
    return ((x + m - 1) // m) * m


def _pad2(a, shape):
    return jnp.pad(a, [(0, s - d) for d, s in zip(a.shape, shape)])


# --------------------------------------------------------------------------- kernels

def _single_tile_kernel(x_ref, w1_ref, gamma_ref, beta_ref, w2_ref, b2_ref, o_ref,
                        *, true_b, b_padded):
    """Whole (padded) batch in one grid step.  x/w1/w2 are bf16, accumulation f32."""
    h = jnp.dot(x_ref[...], w1_ref[...], preferred_element_type=jnp.float32)   # (Bp, Hp)

    inv_b = 1.0 / true_b                       # static, folded at trace time
    # Padded batch rows of x are exact zeros and b1 is dropped, so they contribute
    # nothing to the column sums.
    mean = jnp.sum(h, axis=0, keepdims=True) * inv_b                            # (1, Hp)
    centered = h - mean
    sq = centered * centered
    if b_padded:
        # Two-pass variance: padded rows would contribute mean^2, mask them out.
        rows = jax.lax.broadcasted_iota(jnp.int32, (h.shape[0], 1), 0)
        sq = jnp.where(rows < true_b, sq, 0.0)
    var = jnp.sum(sq, axis=0, keepdims=True) * inv_b   # biased var (PyTorch train mode)

    scale = gamma_ref[...] * jax.lax.rsqrt(var + BN_EPS)
    shift = beta_ref[...] - mean * scale
    act = jnp.maximum(h * scale + shift, 0.0)

    o_ref[...] = (jnp.dot(act.astype(jnp.bfloat16), w2_ref[...],
                          preferred_element_type=jnp.float32)
                  + b2_ref[...]).astype(o_ref.dtype)


def _tiled_kernel(x_ref, w1_ref, gamma_ref, beta_ref, w2_ref, b2_ref, o_ref,
                  h_scr, sum_scr, sumsq_scr, *, true_b, tb):
    """Multi batch-tile fallback: accumulate BN stats across tiles, finalize on the last."""
    t = pl.program_id(0)
    nt = pl.num_programs(0)

    @pl.when(t == 0)
    def _():
        sum_scr[...] = jnp.zeros_like(sum_scr)
        sumsq_scr[...] = jnp.zeros_like(sumsq_scr)

    # linear_1, no bias (it cancels under train-mode BN).  Padded batch rows are zero,
    # so no masking of the statistics is needed.
    h_t = jnp.dot(x_ref[...], w1_ref[...], preferred_element_type=jnp.float32)  # (tb, Hp)
    sum_scr[...] += jnp.sum(h_t, axis=0, keepdims=True)
    sumsq_scr[...] += jnp.sum(h_t * h_t, axis=0, keepdims=True)

    # Stash pre-BN activations in bf16 (halves the biggest scratch + store traffic).
    off = pl.multiple_of(t * tb, _BATCH_ALIGN)
    h_scr[pl.ds(off, tb), :] = h_t.astype(h_scr.dtype)

    @pl.when(t == nt - 1)
    def _():
        inv_b = 1.0 / true_b
        mean = sum_scr[...] * inv_b                                      # (1, Hp)
        var = jnp.maximum(sumsq_scr[...] * inv_b - mean * mean, 0.0)     # biased var
        scale = gamma_ref[...] * jax.lax.rsqrt(var + BN_EPS)
        shift = beta_ref[...] - mean * scale
        act = jnp.maximum(h_scr[...].astype(jnp.float32) * scale + shift, 0.0)
        o_ref[...] = (jnp.dot(act.astype(jnp.bfloat16), w2_ref[...],
                              preferred_element_type=jnp.float32)
                      + b2_ref[...]).astype(o_ref.dtype)


# --------------------------------------------------------------------------- wrapper

def prepare_params(w1, b1, gamma, beta, w2, b2):
    """Pad parameters to lane-dense sizes and cast MXU operands to bf16 once.

    b1 is intentionally dropped: a per-feature constant bias cancels exactly under
    train-mode BatchNorm (the batch-mean subtraction removes it)."""
    del b1
    in_size, hidden = w1.shape
    out_size = w2.shape[1]
    in_p, h_p, out_p = (_round_up(s, _LANE) for s in (in_size, hidden, out_size))
    return {
        "w1": _pad2(jnp.asarray(w1, jnp.float32), (in_p, h_p)).astype(jnp.bfloat16),
        "gamma": _pad2(jnp.asarray(gamma, jnp.float32).reshape(1, -1), (1, h_p)),
        "beta": _pad2(jnp.asarray(beta, jnp.float32).reshape(1, -1), (1, h_p)),
        "w2": _pad2(jnp.asarray(w2, jnp.float32), (h_p, out_p)).astype(jnp.bfloat16),
        "b2": _pad2(jnp.asarray(b2, jnp.float32).reshape(1, -1), (1, out_p)),
        "dims": (in_size, hidden, out_size),
    }


def olivettiface_forward(x, params, *, batch_tile=512):
    B, in_size = x.shape
    in_p, h_p = params["w1"].shape
    out_p = params["w2"].shape[1]
    _, _, out_size = params["dims"]
    assert in_size == params["dims"][0]

    tb = _round_up(min(batch_tile, B), _BATCH_ALIGN)
    b_p = _round_up(B, tb)
    nt = b_p // tb

    # Only x is padded / cast per call (parameters were prepared once).
    x_p = _pad2(x, (b_p, in_p)).astype(jnp.bfloat16)

    def const_spec(shape):
        # Resident blocks: constant index map + single buffering (never re-fetched).
        return pl.BlockSpec(shape, lambda t: (0,) * len(shape),
                            pipeline_mode=pl.Buffered(1))

    in_specs = [
        pl.BlockSpec((tb, in_p), lambda t: (t, 0)),   # x: streamed batch tiles
        const_spec((in_p, h_p)),                      # w1 (bf16, resident)
        const_spec((1, h_p)),                         # gamma
        const_spec((1, h_p)),                         # beta
        const_spec((h_p, out_p)),                     # w2 (bf16, resident)
        const_spec((1, out_p)),                       # b2
    ]
    out_spec = pl.BlockSpec((b_p, out_p), lambda t: (0, 0))   # lane-dense resident output

    if nt == 1:
        kernel = functools.partial(_single_tile_kernel, true_b=B, b_padded=(b_p != B))
        scratch = []
    else:
        kernel = functools.partial(_tiled_kernel, true_b=B, tb=tb)
        scratch = [
            pltpu.VMEM((b_p, h_p), jnp.bfloat16),   # stashed pre-BN activations
            pltpu.VMEM((1, h_p), jnp.float32),      # per-column sum
            pltpu.VMEM((1, h_p), jnp.float32),      # per-column sum of squares
        ]

    # Explicit VMEM budget (v5e scoped default is 16 MiB; cap at v7x's 64 MiB physical).
    resident = (in_p * h_p * 2 + h_p * out_p * 2     # bf16 weights (single-buffered)
                + 2 * tb * in_p * 2                  # double-buffered x tiles (bf16)
                + 2 * b_p * out_p * 4                # output block
                + 3 * h_p * 4 + out_p * 4)           # gamma / beta / b2
    if nt > 1:
        resident += b_p * h_p * 2 + 2 * h_p * 4      # bf16 stash + stat scratch
    vmem_limit = int(min(max(2 * resident + (4 << 20), 32 << 20), 64 << 20))

    out_padded = pl.pallas_call(
        kernel,
        out_shape=jax.ShapeDtypeStruct((b_p, out_p), jnp.float32),
        grid_spec=pltpu.PrefetchScalarGridSpec(
            num_scalar_prefetch=0,
            grid=(nt,),
            in_specs=in_specs,
            out_specs=out_spec,
            scratch_shapes=scratch,
        ),
        compiler_params=pltpu.CompilerParams(
            dimension_semantics=("arbitrary",),   # BN stats accumulate across batch tiles
            vmem_limit_bytes=vmem_limit,
        ),
    )(x_p, params["w1"], params["gamma"], params["beta"], params["w2"], params["b2"])

    return out_padded[:B, :out_size]


def init_params(key, input_size, hidden_size, output_size):
    """PyTorch-style init: Linear U[-1/sqrt(fan_in), +], BN gamma=1, beta=0."""
    k1, k2, k3, k4 = jax.random.split(key, 4)

    bound1 = 1.0 / jnp.sqrt(input_size)
    w1 = jax.random.uniform(k1, (input_size, hidden_size), jnp.float32, -bound1, bound1)
    b1 = jax.random.uniform(k2, (1, hidden_size), jnp.float32, -bound1, bound1)

    gamma = jnp.ones((1, hidden_size), jnp.float32)
    beta = jnp.zeros((1, hidden_size), jnp.float32)

    bound2 = 1.0 / jnp.sqrt(hidden_size)
    w2 = jax.random.uniform(k3, (hidden_size, output_size), jnp.float32, -bound2, bound2)
    b2 = jax.random.uniform(k4, (1, output_size), jnp.float32, -bound2, bound2)

    return w1, b1, gamma, beta, w2, b2


if __name__ == "__main__":
    # Small shapes consistent with the MLP forward (real Olivetti is 4096 -> H -> 40).
    B, INPUT, HIDDEN, OUTPUT = 20, 64, 32, 16

    key = jax.random.PRNGKey(0)
    kx, kp = jax.random.split(key)
    x = jax.random.normal(kx, (B, INPUT), jnp.float32)
    w1, b1, gamma, beta, w2, b2 = init_params(kp, INPUT, HIDDEN, OUTPUT)
    params = prepare_params(w1, b1, gamma, beta, w2, b2)

    # Reference with the same precision policy (bf16 MXU operands, f32 elsewhere),
    # train-mode BN with biased batch variance, including b1 (which the kernel drops
    # because it cancels under mean subtraction).
    h = (jnp.dot(x.astype(jnp.bfloat16), w1.astype(jnp.bfloat16),
                 preferred_element_type=jnp.float32) + b1)
    mean = h.mean(0, keepdims=True)
    var = ((h - mean) ** 2).mean(0, keepdims=True)
    act = jnp.maximum((h - mean) * jax.lax.rsqrt(var + BN_EPS) * gamma + beta, 0.0)
    ref = (jnp.dot(act.astype(jnp.bfloat16), w2.astype(jnp.bfloat16),
                   preferred_element_type=jnp.float32) + b2)

    # Fast path: whole batch in a single grid step (default batch_tile).
    y1 = olivettiface_forward(x, params)
    jax.block_until_ready(y1)
    assert y1.shape == (B, OUTPUT)
    # Tolerance covers the bf16 MXU policy (and the bf16 stash in the fallback path).
    assert jnp.allclose(y1, ref, atol=1e-2, rtol=1e-2), float(jnp.max(jnp.abs(y1 - ref)))

    # Multi-tile fallback path: forced small batch tile exercises cross-tile BN stats.
    y2 = olivettiface_forward(x, params, batch_tile=16)
    jax.block_until_ready(y2)
    assert y2.shape == (B, OUTPUT)
    assert jnp.allclose(y2, ref, atol=1e-2, rtol=1e-2), float(jnp.max(jnp.abs(y2 - ref)))

    print("KERNEL_OK")
</pallas_src>

<mosaic_0001>
module attributes {stable_mosaic.version = 11 : i64} {
  func.func @_single_tile_kernel(%arg0: i32, %arg1: memref<32x128xbf16, #tpu.memory_space<vmem>>, %arg2: memref<128x128xbf16, #tpu.memory_space<vmem>>, %arg3: memref<1x128xf32, #tpu.memory_space<vmem>>, %arg4: memref<1x128xf32, #tpu.memory_space<vmem>>, %arg5: memref<128x128xbf16, #tpu.memory_space<vmem>>, %arg6: memref<1x128xf32, #tpu.memory_space<vmem>>, %arg7: memref<32x128xf32, #tpu.memory_space<vmem>>) attributes {dimension_semantics = [#tpu.dimension_semantics<arbitrary>], iteration_bounds = array<i64: 1>, scalar_prefetch = 0 : i64, scratch_operands = 0 : i64, tpu.core_type = #tpu.core_type<tc>, window_params = [{transform_indices = @transform_0, window_bounds = array<i64: 32, 128>}, {pipeline_mode = #tpu.pipeline_mode<synchronous>, transform_indices = @transform_1, window_bounds = array<i64: 128, 128>}, {pipeline_mode = #tpu.pipeline_mode<synchronous>, transform_indices = @transform_2, window_bounds = array<i64: 1, 128>}, {pipeline_mode = #tpu.pipeline_mode<synchronous>, transform_indices = @transform_3, window_bounds = array<i64: 1, 128>}, {pipeline_mode = #tpu.pipeline_mode<synchronous>, transform_indices = @transform_4, window_bounds = array<i64: 128, 128>}, {pipeline_mode = #tpu.pipeline_mode<synchronous>, transform_indices = @transform_5, window_bounds = array<i64: 1, 128>}, {pipeline_mode = #tpu.pipeline_mode<synchronous>, transform_indices = @transform_6, window_bounds = array<i64: 32, 128>}]} {
    %c0 = arith.constant 0 : index
    %c0_0 = arith.constant 0 : index
    %0 = vector.load %arg1[%c0, %c0_0] : memref<32x128xbf16, #tpu.memory_space<vmem>>, vector<32x128xbf16>
    %c0_1 = arith.constant 0 : index
    %c0_2 = arith.constant 0 : index
    %1 = vector.load %arg2[%c0_1, %c0_2] : memref<128x128xbf16, #tpu.memory_space<vmem>>, vector<128x128xbf16>
    %cst = arith.constant dense<0.000000e+00> : vector<32x128xf32>
    %2 = tpu.matmul %0, %1, %cst {dimension_numbers = #tpu.dot_dimension_numbers<[1], [0], [0], [1], [0, 0, 1, 1], [], []>} : vector<32x128xbf16>, vector<128x128xbf16>, vector<32x128xf32> -> vector<32x128xf32>
    %cst_3 = arith.constant dense<0.000000e+00> : vector<128xf32>
    %3 = vector.multi_reduction <add>, %2, %cst_3 [0] : vector<32x128xf32> to vector<128xf32>
    %4 = vector.shape_cast %3 : vector<128xf32> to vector<1x128xf32>
    %cst_4 = arith.constant 5.000000e-02 : f32
    %5 = vector.broadcast %cst_4 : f32 to vector<1x128xf32>
    %6 = arith.mulf %4, %5 : vector<1x128xf32>
    %7 = vector.broadcast %6 : vector<1x128xf32> to vector<32x128xf32>
    %8 = arith.subf %2, %7 : vector<32x128xf32>
    %9 = arith.mulf %8, %8 : vector<32x128xf32>
    %10 = tpu.iota {dimensions = array<i32: 0>} : vector<32x1xi32>
    %c20_i32 = arith.constant 20 : i32
    %11 = vector.broadcast %c20_i32 : i32 to vector<32x1xi32>
    %12 = arith.cmpi slt, %10, %11 : vector<32x1xi32>
    %cst_5 = arith.constant 0.000000e+00 : f32
    %13 = vector.shape_cast %12 : vector<32x1xi1> to vector<32x1xi1>
    %14 = vector.broadcast %13 : vector<32x1xi1> to vector<32x128xi1>
    %15 = vector.broadcast %cst_5 : f32 to vector<32x128xf32>
    %16 = arith.select %14, %9, %15 : vector<32x128xi1>, vector<32x128xf32>
    %cst_6 = arith.constant dense<0.000000e+00> : vector<128xf32>
    %17 = vector.multi_reduction <add>, %16, %cst_6 [0] : vector<32x128xf32> to vector<128xf32>
    %18 = vector.shape_cast %17 : vector<128xf32> to vector<1x128xf32>
    %cst_7 = arith.constant 5.000000e-02 : f32
    %19 = vector.broadcast %cst_7 : f32 to vector<1x128xf32>
    %20 = arith.mulf %18, %19 : vector<1x128xf32>
    %c0_8 = arith.constant 0 : index
    %c0_9 = arith.constant 0 : index
    %21 = vector.load %arg3[%c0_8, %c0_9] : memref<1x128xf32, #tpu.memory_space<vmem>>, vector<1x128xf32>
    %cst_10 = arith.constant 9.99999974E-6 : f32
    %22 = vector.broadcast %cst_10 : f32 to vector<1x128xf32>
    %23 = arith.addf %20, %22 : vector<1x128xf32>
    %24 = math.rsqrt %23 : vector<1x128xf32>
    %25 = arith.mulf %21, %24 : vector<1x128xf32>
    %c0_11 = arith.constant 0 : index
    %c0_12 = arith.constant 0 : index
    %26 = vector.load %arg4[%c0_11, %c0_12] : memref<1x128xf32, #tpu.memory_space<vmem>>, vector<1x128xf32>
    %27 = arith.mulf %6, %25 : vector<1x128xf32>
    %28 = arith.subf %26, %27 : vector<1x128xf32>
    %29 = vector.broadcast %25 : vector<1x128xf32> to vector<32x128xf32>
    %30 = arith.mulf %2, %29 : vector<32x128xf32>
    %31 = vector.broadcast %28 : vector<1x128xf32> to vector<32x128xf32>
    %32 = arith.addf %30, %31 : vector<32x128xf32>
    %cst_13 = arith.constant 0.000000e+00 : f32
    %33 = vector.broadcast %cst_13 : f32 to vector<32x128xf32>
    %34 = arith.maximumf %32, %33 : vector<32x128xf32>
    %35 = arith.truncf %34 : vector<32x128xf32> to vector<32x128xbf16>
    %c0_14 = arith.constant 0 : index
    %c0_15 = arith.constant 0 : index
    %36 = vector.load %arg5[%c0_14, %c0_15] : memref<128x128xbf16, #tpu.memory_space<vmem>>, vector<128x128xbf16>
    %cst_16 = arith.constant dense<0.000000e+00> : vector<32x128xf32>
    %37 = tpu.matmul %35, %36, %cst_16 {dimension_numbers = #tpu.dot_dimension_numbers<[1], [0], [0], [1], [0, 0, 1, 1], [], []>} : vector<32x128xbf16>, vector<128x128xbf16>, vector<32x128xf32> -> vector<32x128xf32>
    %c0_17 = arith.constant 0 : index
    %c0_18 = arith.constant 0 : index
    %38 = vector.load %arg6[%c0_17, %c0_18] : memref<1x128xf32, #tpu.memory_space<vmem>>, vector<1x128xf32>
    %39 = vector.broadcast %38 : vector<1x128xf32> to vector<32x128xf32>
    %40 = arith.addf %37, %39 : vector<32x128xf32>
    %c0_19 = arith.constant 0 : index
    %c0_20 = arith.constant 0 : index
    %41 = vector.load %arg7[%c0_19, %c0_20] : memref<32x128xf32, #tpu.memory_space<vmem>>, vector<32x128xf32>
    tpu.vector_store %arg7[%c0_19, %c0_20], %40 {strides = array<i32>} : memref<32x128xf32, #tpu.memory_space<vmem>>, vector<32x128xf32>,
    return
  }
  func.func @transform_0(%arg0: i32) -> (i32, i32) {
    %c0_i32 = arith.constant 0 : i32
    %c0_i32_0 = arith.constant 0 : i32
    return %arg0, %c0_i32 : i32, i32
  }
  func.func @transform_1(%arg0: i32) -> (i32, i32) {
    %c0_i32 = arith.constant 0 : i32
    %c0_i32_0 = arith.constant 0 : i32
    %c0_i32_1 = arith.constant 0 : i32
    return %c0_i32, %c0_i32_0 : i32, i32
  }
  func.func @transform_2(%arg0: i32) -> (i32, i32) {
    %c0_i32 = arith.constant 0 : i32
    %c0_i32_0 = arith.constant 0 : i32
    %c0_i32_1 = arith.constant 0 : i32
    return %c0_i32, %c0_i32_0 : i32, i32
  }
  func.func @transform_3(%arg0: i32) -> (i32, i32) {
    %c0_i32 = arith.constant 0 : i32
    %c0_i32_0 = arith.constant 0 : i32
    %c0_i32_1 = arith.constant 0 : i32
    return %c0_i32, %c0_i32_0 : i32, i32
  }
  func.func @transform_4(%arg0: i32) -> (i32, i32) {
    %c0_i32 = arith.constant 0 : i32
    %c0_i32_0 = arith.constant 0 : i32
    %c0_i32_1 = arith.constant 0 : i32
    return %c0_i32, %c0_i32_0 : i32, i32
  }
  func.func @transform_5(%arg0: i32) -> (i32, i32) {
    %c0_i32 = arith.constant 0 : i32
    %c0_i32_0 = arith.constant 0 : i32
    %c0_i32_1 = arith.constant 0 : i32
    return %c0_i32, %c0_i32_0 : i32, i32
  }
  func.func @transform_6(%arg0: i32) -> (i32, i32) {
    %c0_i32 = arith.constant 0 : i32
    %c0_i32_0 = arith.constant 0 : i32
    %c0_i32_1 = arith.constant 0 : i32
    return %c0_i32, %c0_i32_0 : i32, i32
  }
}

</mosaic_0001>

<llo_original>
// kernel: tpu_custom_call.1
$region0: #{tpu_custom_call.1}
  #allocation0 [shape = 'u32[]', space=smem, size = 0x4, offset = 0x4, fixed_abs, tag = 'smem constant byte address 0x4 - core index']
  #allocation1 [shape = 'u32[144,128]{1,0:T(1,128)}', space=vmem, size = 0x12000, scoped, tag = 'internal scratch']
  %s0 = inlined_call_operand.hbm [shape: bf16[32,128], index: 0, kind: input, shape index: {}]
  %s1 = inlined_call_operand.hbm [shape: bf16[128,128], index: 1, kind: input, shape index: {}]
  %s2 = inlined_call_operand.vmem [shape: f32[1,128], index: 2, kind: input, shape index: {}]
  %s3 = inlined_call_operand.vmem [shape: f32[1,128], index: 3, kind: input, shape index: {}]
  %s4 = inlined_call_operand.hbm [shape: bf16[128,128], index: 4, kind: input, shape index: {}]
  %s5 = inlined_call_operand.vmem [shape: f32[1,128], index: 5, kind: input, shape index: {}]
  %s6 = inlined_call_operand.hbm [shape: f32[32,128], index: 6, kind: output, shape index: {}]
  %s7 = sld [smem:[#allocation0]]
  $region46: #{tpu_custom_call.1} parent=0
    _
  %s9 = ssub.s32 1, %s7
  %s10 = scalar_select 0, %s9, %s7
  $region1: #{tpu_custom_call.1} parent=0
    #allocation2 [shape = 'u8[8192]{0}', space=vmem, size = 0x2000, scoped, tag = 'input window, operand 0, single buffered']
    #allocation3 [shape = 's32[1]{0}', space=sflag, size = 0x4, scoped, tag = 'scoped memory for tpu_custom_call.1']
    #allocation4 [shape = 's32[1]{0}', space=sflag, size = 0x4, scoped, tag = 'scoped memory for tpu_custom_call.1']
    #allocation5 [shape = 'u8[32768]{0}', space=vmem, size = 0x8000, scoped, tag = 'input window, operand 1, single buffered']
    #allocation6 [shape = 's32[1]{0}', space=sflag, size = 0x4, scoped, tag = 'scoped memory for tpu_custom_call.1']
    #allocation7 [shape = 'u8[32768]{0}', space=vmem, size = 0x8000, scoped, tag = 'input window, operand 4, single buffered']
    #allocation8 [shape = 'u8[16384]{0}', space=vmem, size = 0x4000, scoped, tag = 'output window, operand 0, single buffered']
    %11 = vsyncpa [#allocation3], 0
    %12 = vsyncpa [#allocation6], 0
    %13 = vsyncpa [#allocation4], 0
    // Predicated region
    $region2: #{tpu_custom_call.1} parent=1 // pred_check
      _
    $region3: #{tpu_custom_call.1} parent=1 // pred_check_branch
      %15 = sbr.rel (0) target = $region5
    $region4: #{tpu_custom_call.1} parent=1 // pred_region
      %s17 = ssub.s32 256, 256
      %18 = vsyncadd [#allocation3], %s17
      %s19 = sshll.u32 [#allocation2], 4
      %s20 = int_to_ptr.vmem [resolvable:$true] %s19
      %25 = dma.hbm_to_vmem [thread:$0]  %s0, 256, %s20, [#allocation3], 64, 64, 4
    $region5: #{tpu_custom_call.1} parent=1 // pred_fallthru
      _
    // Predicated region
    $region6: #{tpu_custom_call.1} parent=1 // pred_check
      _
    $region7: #{tpu_custom_call.1} parent=1 // pred_check_branch
      %27 = sbr.rel (0) target = $region9
    $region8: #{tpu_custom_call.1} parent=1 // pred_region
      %s29 = ssub.s32 1024, 1024
      %30 = vsyncadd [#allocation6], %s29
      %s31 = sshll.u32 [#allocation5], 4
      %s32 = int_to_ptr.vmem [resolvable:$true] %s31
      %37 = dma.hbm_to_vmem [thread:$0]  %s1, 1024, %s32, [#allocation6], 64, 64, 4
    $region9: #{tpu_custom_call.1} parent=1 // pred_fallthru
      _
    // Predicated region
    $region10: #{tpu_custom_call.1} parent=1 // pred_check
      _
    $region11: #{tpu_custom_call.1} parent=1 // pred_check_branch
      %39 = sbr.rel (0) target = $region13
    $region12: #{tpu_custom_call.1} parent=1 // pred_region
      _
    $region13: #{tpu_custom_call.1} parent=1 // pred_fallthru
      _
    // Predicated region
    $region14: #{tpu_custom_call.1} parent=1 // pred_check
      _
    $region15: #{tpu_custom_call.1} parent=1 // pred_check_branch
      %41 = sbr.rel (0) target = $region17
    $region16: #{tpu_custom_call.1} parent=1 // pred_region
      _
    $region17: #{tpu_custom_call.1} parent=1 // pred_fallthru
      _
    // Predicated region
    $region18: #{tpu_custom_call.1} parent=1 // pred_check
      _
    $region19: #{tpu_custom_call.1} parent=1 // pred_check_branch
      %43 = sbr.rel (0) target = $region21
    $region20: #{tpu_custom_call.1} parent=1 // pred_region
      %s45 = ssub.s32 1024, 1024
      %46 = vsyncadd [#allocation6], %s45
      %s47 = sshll.u32 [#allocation7], 4
      %s48 = int_to_ptr.vmem [resolvable:$true] %s47
      %53 = dma.hbm_to_vmem [thread:$0]  %s4, 1024, %s48, [#allocation6], 64, 64, 4
    $region21: #{tpu_custom_call.1} parent=1 // pred_fallthru
      _
    // Predicated region
    $region22: #{tpu_custom_call.1} parent=1 // pred_check
      _
    $region23: #{tpu_custom_call.1} parent=1 // pred_check_branch
      %55 = sbr.rel (0) target = $region25
    $region24: #{tpu_custom_call.1} parent=1 // pred_region
      _
    $region25: #{tpu_custom_call.1} parent=1 // pred_fallthru
      _
    // Predicated region
    $region26: #{tpu_custom_call.1} parent=1 // pred_check
      _
    $region27: #{tpu_custom_call.1} parent=1 // pred_check_branch
      %57 = sbr.rel (0) target = $region29
    $region28: #{tpu_custom_call.1} parent=1 // pred_region
      %58 = dma.done [#allocation3], 256
    $region29: #{tpu_custom_call.1} parent=1 // pred_fallthru
      _
    // Predicated region
    $region30: #{tpu_custom_call.1} parent=1 // pred_check
      _
    $region31: #{tpu_custom_call.1} parent=1 // pred_check_branch
      %60 = sbr.rel (0) target = $region33
    $region32: #{tpu_custom_call.1} parent=1 // pred_region
      %61 = dma.done [#allocation6], 1024
    $region33: #{tpu_custom_call.1} parent=1 // pred_fallthru
      _
    // Predicated region
    $region34: #{tpu_custom_call.1} parent=1 // pred_check
      _
    $region35: #{tpu_custom_call.1} parent=1 // pred_check_branch
      %63 = sbr.rel (0) target = $region37
    $region36: #{tpu_custom_call.1} parent=1 // pred_region
      %64 = dma.done [#allocation6], 1024
    $region37: #{tpu_custom_call.1} parent=1 // pred_fallthru
      _
    %v66 = vld [vmem:[#allocation2] sm:$0xf]
    %v67 = vld [vmem:[#allocation2 + $0x4] sm:$0xf]
    %v68 = vld [vmem:[#allocation2 + $0x8] sm:$0xf]
    %v69 = vld [vmem:[#allocation2 + $0xc] sm:$0xf]
    %v70 = vld [vmem:[#allocation5] sm:$0xf]
    %v71 = vld [vmem:[#allocation5 + $0x4] sm:$0xf]
    %v72 = vld [vmem:[#allocation5 + $0x8] sm:$0xf]
    %v73 = vld [vmem:[#allocation5 + $0xc] sm:$0xf]
    %v74 = vld [vmem:[#allocation5 + $0x10] sm:$0xf]
    %v75 = vld [vmem:[#allocation5 + $0x14] sm:$0xf]
    %v76 = vld [vmem:[#allocation5 + $0x18] sm:$0xf]
    %v77 = vld [vmem:[#allocation5 + $0x1c] sm:$0xf]
    %v78 = vld [vmem:[#allocation5 + $0x20] sm:$0xf]
    %v79 = vld [vmem:[#allocation5 + $0x24] sm:$0xf]
    %v80 = vld [vmem:[#allocation5 + $0x28] sm:$0xf]
    %v81 = vld [vmem:[#allocation5 + $0x2c] sm:$0xf]
    %v82 = vld [vmem:[#allocation5 + $0x30] sm:$0xf]
    %v83 = vld [vmem:[#allocation5 + $0x34] sm:$0xf]
    %v84 = vld [vmem:[#allocation5 + $0x38] sm:$0xf]
    %v85 = vld [vmem:[#allocation5 + $0x3c] sm:$0xf]
    %v90 = vunpack.c.l.b16 %v66
    %v91 = vunpack.c.l.b16 %v67
    %v92 = vunpack.c.l.b16 %v68
    %v93 = vunpack.c.l.b16 %v69
    %v94 = vpack.c.b16 %v91, %v90
    %v95 = vpack.c.b16 %v93, %v92
    %v114 = vunpack.c.l.b16 %v70
    %v115 = vunpack.c.l.b16 %v71
    %v116 = vunpack.c.l.b16 %v72
    %v117 = vunpack.c.l.b16 %v73
    %v118 = vunpack.c.l.b16 %v74
    %v119 = vunpack.c.l.b16 %v75
    %v120 = vunpack.c.l.b16 %v76
    %v121 = vunpack.c.l.b16 %v77
    %v122 = vunpack.c.l.b16 %v78
    %v123 = vunpack.c.l.b16 %v79
    %v124 = vunpack.c.l.b16 %v80
    %v125 = vunpack.c.l.b16 %v81
    %v126 = vunpack.c.l.b16 %v82
    %v127 = vunpack.c.l.b16 %v83
    %v128 = vunpack.c.l.b16 %v84
    %v129 = vunpack.c.l.b16 %v85
    %v130 = vpack.c.b16 %v115, %v114
    %v131 = vpack.c.b16 %v117, %v116
    %v132 = vpack.c.b16 %v119, %v118
    %v133 = vpack.c.b16 %v121, %v120
    %v134 = vpack.c.b16 %v123, %v122
    %v135 = vpack.c.b16 %v125, %v124
    %v136 = vpack.c.b16 %v127, %v126
    %v137 = vpack.c.b16 %v129, %v128
    %146 = vmatprep.subr.bf16.mxu0 0
    %147 = vmatpush1.bf16.msra.mxu0 %v130
    %148 = vmatprep.subr.bf16.mxu0 0
    %149 = vmatpush1.bf16.msra.mxu0 %v131
    %150 = vmatprep.subr.bf16.mxu0 0
    %151 = vmatpush1.bf16.msra.mxu0 %v132
    %152 = vmatprep.subr.bf16.mxu0 0
    %153 = vmatpush1.bf16.msra.mxu0 %v133
    %154 = vmatprep.subr.bf16.mxu0 0
    %155 = vmatpush1.bf16.msra.mxu0 %v134
    %156 = vmatprep.subr.bf16.mxu0 0
    %157 = vmatpush1.bf16.msra.mxu0 %v135
    %158 = vmatprep.subr.bf16.mxu0 0
    %159 = vmatpush1.bf16.msra.mxu0 %v136
    %160 = vmatprep.subr.bf16.mxu0 0
    %161 = vmatpush1.bf16.msra.mxu0 %v137
    %162 = vmatprep.subr.bf16.mxu0 0
    %163 = vmatpush1.bf16.msra.mxu0 0
    %164 = vmatprep.subr.bf16.mxu0 0
    %165 = vmatpush1.bf16.msra.mxu0 0
    %166 = vmatprep.subr.bf16.mxu0 0
    %167 = vmatpush1.bf16.msra.mxu0 0
    %168 = vmatprep.subr.bf16.mxu0 0
    %169 = vmatpush1.bf16.msra.mxu0 0
    %170 = vmatprep.subr.bf16.mxu0 0
    %171 = vmatpush1.bf16.msra.mxu0 0
    %172 = vmatprep.subr.bf16.mxu0 0
    %173 = vmatpush1.bf16.msra.mxu0 0
    %174 = vmatprep.subr.bf16.mxu0 0
    %175 = vmatpush1.bf16.msra.mxu0 0
    %176 = vmatprep.subr.bf16.mxu0 0
    %177 = vmatpush1.bf16.msra.mxu0 0
    %178 = vmatprep.mubr.bf16.mxu0 0
    %179 = vmatmul.mubr.bf16.gmra.mrb[0].mxu0 %v94
    %v180 = vpop.f32.mrb[0].mxu0
    %v181 = vadd.f32 0.0, %v180
    %v182 = vpop.f32.mrb[0].mxu0
    %v183 = vpop.f32.mrb[0].mxu0
    %v184 = vadd.f32 0.0, %v183
    %v185 = vpop.f32.mrb[0].mxu0
    %186 = vmatprep.mubr.bf16.mxu0 0
    %187 = vmatmul.mubr.bf16.gmra.mrb[0].mxu0 %v95
    %v188 = vpop.f32.mrb[0].mxu0
    %v189 = vadd.f32 0.0, %v188
    %v190 = vpop.f32.mrb[0].mxu0
    %v191 = vpop.f32.mrb[0].mxu0
    %v192 = vadd.f32 0.0, %v191
    %v193 = vpop.f32.mrb[0].mxu0
    %194 = vdwg.mxu0
    %v195 = vadd.f32 %v181, %v184
    %v196 = vadd.f32 %v195, %v189
    %v197 = vadd.f32 %v196, %v192
    %v198 = vrot.slane %v197, 4
    %v199 = vadd.f32 %v197, %v198
    %v200 = vrot.slane %v199, 2
    %v201 = vadd.f32 %v199, %v200
    %v202 = vrot.slane %v201, 1
    %v203 = vadd.f32 %v201, %v202
    %v204 = vmul.f32 %v203, 0.05
    %v205 = vsub.f32 %v181, %v204
    %v206 = vsub.f32 %v184, %v204
    %v207 = vsub.f32 %v189, %v204
    %v208 = vsub.f32 %v192, %v204
    %v209 = vmul.f32 %v205, %v205
    %v210 = vmul.f32 %v206, %v206
    %v211 = vmul.f32 %v207, %v207
    %v212 = vmul.f32 %v208, %v208
    %v213 = vlaneseq
    %v214 = vshrl.u32 %v213, 7
    %v215 = vadd.s32 %v214, 8
    %v216 = vadd.s32 %v214, 16
    %v217 = vadd.s32 %v214, 24
    %vm218 = vcmp.lt.s32.totalorder %v214, 20
    %vm219 = vcmp.lt.s32.totalorder %v215, 20
    %vm220 = vcmp.lt.s32.totalorder %v216, 20
    %vm221 = vcmp.lt.s32.totalorder %v217, 20
    %v222 = vsel %vm218, 1, 0
    %v223 = vsel %vm219, 1, 0
    %v224 = vsel %vm220, 1, 0
    %v225 = vsel %vm221, 1, 0
    %vm226 = vcmp.eq.s32.totalorder %v222, 1
    %vm227 = vcmp.eq.s32.totalorder %v223, 1
    %vm228 = vcmp.eq.s32.totalorder %v224, 1
    %vm229 = vcmp.eq.s32.totalorder %v225, 1
    %v230 = vsel %vm226, %v209, 0.0
    %v231 = vsel %vm227, %v210, 0.0
    %v232 = vsel %vm228, %v211, 0.0
    %v233 = vsel %vm229, %v212, 0.0
    %v234 = vadd.f32 %v230, %v231
    %v235 = vadd.f32 %v234, %v232
    %v236 = vadd.f32 %v235, %v233
    %v237 = vrot.slane %v236, 4
    %v238 = vadd.f32 %v236, %v237
    %v239 = vrot.slane %v238, 2
    %v240 = vadd.f32 %v238, %v239
    %v241 = vrot.slane %v240, 1
    %v242 = vadd.f32 %v240, %v241
    %v243 = vmul.f32 %v242, 0.05
    %v244 = vld [vmem:[%s2] sm:$0x1]
    %v245 = vadd.f32 %v243, 1e-05
    %v246 = vrsqrt.pop %v245
    %v247 = vmul.f32 %v244, %v246
    %v248 = vld [vmem:[%s3] sm:$0x1]
    %v249 = vmul.f32 %v204, %v247
    %v250 = vsub.f32 %v248, %v249
    %v252 = vlaneseq
    %v253 = vshrl.u32 %v252, 7
    %v254 = vsub.s32 0, %v253
    %v255 = vrot.slane %v247, %v254
    %v257 = vmul.f32 %v181, %v255
    %v258 = vmul.f32 %v184, %v255
    %v259 = vmul.f32 %v189, %v255
    %v260 = vmul.f32 %v192, %v255
    %v262 = vlaneseq
    %v263 = vshrl.u32 %v262, 7
    %v264 = vsub.s32 0, %v263
    %v265 = vrot.slane %v250, %v264
    %v267 = vadd.f32 %v257, %v265
    %v268 = vadd.f32 %v258, %v265
    %v269 = vadd.f32 %v259, %v265
    %v270 = vadd.f32 %v260, %v265
    %v271 = vmax.f32 %v267, 0.0
    %v272 = vmax.f32 %v268, 0.0
    %v273 = vmax.f32 %v269, 0.0
    %v274 = vmax.f32 %v270, 0.0
    %v275 = vpack.c.bf16 %v272, %v271
    %v276 = vpack.c.bf16 %v274, %v273
    %v277 = vld [vmem:[#allocation7] sm:$0xf]
    %v278 = vld [vmem:[#allocation7 + $0x4] sm:$0xf]
    %v279 = vld [vmem:[#allocation7 + $0x8] sm:$0xf]
    %v280 = vld [vmem:[#allocation7 + $0xc] sm:$0xf]
    %v281 = vld [vmem:[#allocation7 + $0x10] sm:$0xf]
    %v282 = vld [vmem:[#allocation7 + $0x14] sm:$0xf]
    %v283 = vld [vmem:[#allocation7 + $0x18] sm:$0xf]
    %v284 = vld [vmem:[#allocation7 + $0x1c] sm:$0xf]
    %v285 = vld [vmem:[#allocation7 + $0x20] sm:$0xf]
    %v286 = vld [vmem:[#allocation7 + $0x24] sm:$0xf]
    %v287 = vld [vmem:[#allocation7 + $0x28] sm:$0xf]
    %v288 = vld [vmem:[#allocation7 + $0x2c] sm:$0xf]
    %v289 = vld [vmem:[#allocation7 + $0x30] sm:$0xf]
    %v290 = vld [vmem:[#allocation7 + $0x34] sm:$0xf]
    %v291 = vld [vmem:[#allocation7 + $0x38] sm:$0xf]
    %v292 = vld [vmem:[#allocation7 + $0x3c] sm:$0xf]
    %v293 = vld [vmem:[%s5] sm:$0x1]
    %v295 = vlaneseq
    %v296 = vshrl.u32 %v295, 7
    %v297 = vsub.s32 0, %v296
    %v298 = vrot.slane %v293, %v297
    %v316 = vunpack.c.l.b16 %v277
    %v317 = vunpack.c.l.b16 %v278
    %v318 = vunpack.c.l.b16 %v279
    %v319 = vunpack.c.l.b16 %v280
    %v320 = vunpack.c.l.b16 %v281
    %v321 = vunpack.c.l.b16 %v282
    %v322 = vunpack.c.l.b16 %v283
    %v323 = vunpack.c.l.b16 %v284
    %v324 = vunpack.c.l.b16 %v285
    %v325 = vunpack.c.l.b16 %v286
    %v326 = vunpack.c.l.b16 %v287
    %v327 = vunpack.c.l.b16 %v288
    %v328 = vunpack.c.l.b16 %v289
    %v329 = vunpack.c.l.b16 %v290
    %v330 = vunpack.c.l.b16 %v291
    %v331 = vunpack.c.l.b16 %v292
    %v332 = vpack.c.b16 %v317, %v316
    %v333 = vpack.c.b16 %v319, %v318
    %v334 = vpack.c.b16 %v321, %v320
    %v335 = vpack.c.b16 %v323, %v322
    %v336 = vpack.c.b16 %v325, %v324
    %v337 = vpack.c.b16 %v327, %v326
    %v338 = vpack.c.b16 %v329, %v328
    %v339 = vpack.c.b16 %v331, %v330
    %348 = vmatprep.subr.bf16.mxu0 0
    %349 = vmatpush1.bf16.msra.mxu0 %v332
    %350 = vmatprep.subr.bf16.mxu0 0
    %351 = vmatpush1.bf16.msra.mxu0 %v333
    %352 = vmatprep.subr.bf16.mxu0 0
    %353 = vmatpush1.bf16.msra.mxu0 %v334
    %354 = vmatprep.subr.bf16.mxu0 0
    %355 = vmatpush1.bf16.msra.mxu0 %v335
    %356 = vmatprep.subr.bf16.mxu0 0
    %357 = vmatpush1.bf16.msra.mxu0 %v336
    %358 = vmatprep.subr.bf16.mxu0 0
    %359 = vmatpush1.bf16.msra.mxu0 %v337
    %360 = vmatprep.subr.bf16.mxu0 0
    %361 = vmatpush1.bf16.msra.mxu0 %v338
    %362 = vmatprep.subr.bf16.mxu0 0
    %363 = vmatpush1.bf16.msra.mxu0 %v339
    %364 = vmatprep.subr.bf16.mxu0 0
    %365 = vmatpush1.bf16.msra.mxu0 0
    %366 = vmatprep.subr.bf16.mxu0 0
    %367 = vmatpush1.bf16.msra.mxu0 0
    %368 = vmatprep.subr.bf16.mxu0 0
    %369 = vmatpush1.bf16.msra.mxu0 0
    %370 = vmatprep.subr.bf16.mxu0 0
    %371 = vmatpush1.bf16.msra.mxu0 0
    %372 = vmatprep.subr.bf16.mxu0 0
    %373 = vmatpush1.bf16.msra.mxu0 0
    %374 = vmatprep.subr.bf16.mxu0 0
    %375 = vmatpush1.bf16.msra.mxu0 0
    %376 = vmatprep.subr.bf16.mxu0 0
    %377 = vmatpush1.bf16.msra.mxu0 0
    %378 = vmatprep.subr.bf16.mxu0 0
    %379 = vmatpush1.bf16.msra.mxu0 0
    %380 = vmatprep.mubr.bf16.mxu0 0
    %381 = vmatmul.mubr.bf16.gmra.mrb[0].mxu0 %v275
    %v382 = vpop.f32.mrb[0].mxu0
    %v383 = vadd.f32 %v298, %v382
    %v384 = vpop.f32.mrb[0].mxu0
    %v385 = vpop.f32.mrb[0].mxu0
    %v386 = vadd.f32 %v298, %v385
    %v387 = vpop.f32.mrb[0].mxu0
    %388 = vmatprep.mubr.bf16.mxu0 0
    %389 = vmatmul.mubr.bf16.gmra.mrb[0].mxu0 %v276
    %v390 = vpop.f32.mrb[0].mxu0
    %v391 = vadd.f32 %v298, %v390
    %v392 = vpop.f32.mrb[0].mxu0
    %v393 = vpop.f32.mrb[0].mxu0
    %v394 = vadd.f32 %v298, %v393
    %v395 = vpop.f32.mrb[0].mxu0
    %396 = vdwg.mxu0
    %397 = vst [vmem:[#allocation8] sm:$0xff] %v383
    %398 = vst [vmem:[#allocation8 + $0x8] sm:$0xff] %v386
    %399 = vst [vmem:[#allocation8 + $0x10] sm:$0xff] %v391
    %400 = vst [vmem:[#allocation8 + $0x18] sm:$0xff] %v394
    // Predicated region
    $region38: #{tpu_custom_call.1} parent=1 // pred_check
      _
    $region39: #{tpu_custom_call.1} parent=1 // pred_check_branch
      %402 = sbr.rel (0) target = $region41
    $region40: #{tpu_custom_call.1} parent=1 // pred_region
      %s404 = ssub.s32 512, 512
      %405 = vsyncadd [#allocation4], %s404
      %s406 = sshll.u32 [#allocation8], 4
      %s407 = int_to_ptr.vmem [resolvable:$true] %s406
      %412 = dma.vmem_to_hbm [thread:$0]  %s407, 512, %s6, [#allocation4], 128, 128, 8
    $region41: #{tpu_custom_call.1} parent=1 // pred_fallthru
      _
    // Predicated region
    $region42: #{tpu_custom_call.1} parent=1 // pred_check
      _
    $region43: #{tpu_custom_call.1} parent=1 // pred_check_branch
      %414 = sbr.rel (0) target = $region45
    $region44: #{tpu_custom_call.1} parent=1 // pred_region
      %415 = dma.done [#allocation4], 512
    $region45: #{tpu_custom_call.1} parent=1 // pred_fallthru
      _
    %416 = vsyncpa [#allocation3], 1
    %417 = vsyncpa [#allocation6], 1
    %418 = vsyncpa [#allocation4], 1

</llo_original>
